<compile_context>
chip_gen: v6e
topology: v6e:2x2x1
jax: 0.10.0
libtpu: 0.0.40
codegen_flags: <defaults>
</compile_context>

<pallas_src>
import functools

import jax
import jax.numpy as jnp
from jax.experimental import pallas as pl
from jax.experimental.pallas import tpu as pltpu


# --------------------------------------------------------------------------- kernel
def _mlp_onehot_kernel(tac_ref, w_in_ref, b_in_ref, w_hid_ref, b_hid_ref,
                       w_out_ref, b_out_ref, o_ref, *, num_hidden, num_tactics_p):
    """one_hot(idx) @ W_in -> [relu -> @ W_hid]*L -> relu -> @ W_out + b.

    f32 accumulation everywhere (preferred_element_type); biases are f32;
    only the matmul operands are cast to the (possibly bf16) weight dtype.
    """
    idx = tac_ref[...]                                               # (tile_b, 1) int32
    tile_b = idx.shape[0]

    # Input layer as a one-hot MXU matmul (static choice for small T: a sublane
    # gather driven by lane-held indices has no native TPU lowering).
    iota = jax.lax.broadcasted_iota(jnp.int32, (tile_b, num_tactics_p), 1)
    one_hot = (iota == idx).astype(w_in_ref.dtype)                   # (tile_b, Tp)
    h = jnp.dot(one_hot, w_in_ref[...],
                preferred_element_type=jnp.float32) + b_in_ref[...]  # (tile_b, Hp) f32

    # Hidden layers: relu (f32, VPU) -> matmul (f32 accumulation) -> bias (f32).
    for l in range(num_hidden):
        a = jnp.maximum(h, 0.0).astype(w_hid_ref.dtype)
        h = jnp.dot(a, w_hid_ref[l],
                    preferred_element_type=jnp.float32) + b_hid_ref[l]

    # Output layer: relu -> (tile_b, Hp) @ (Hp, 1).  (tile_b, 1) block store.
    a = jnp.maximum(h, 0.0).astype(w_out_ref.dtype)
    o_ref[...] = jnp.dot(a, w_out_ref[...],
                         preferred_element_type=jnp.float32) + b_out_ref[...]


# --------------------------------------------------------------------------- helpers
def _round_up(x, m):
    return (x + m - 1) // m * m


def _pad_to(x, axis, target):
    pad = target - x.shape[axis]
    if pad == 0:
        return x
    widths = [(0, 0)] * x.ndim
    widths[axis] = (0, pad)
    return jnp.pad(x, widths)


def _num_tensorcores():
    """2 TensorCores per chip on v7x, 1 on v5e/v6e; default to 1 if unknown."""
    try:
        kind = jax.devices()[0].device_kind.lower()
        return 2 if ("v7" in kind or "7x" in kind) else 1
    except Exception:
        return 1


def _choose_tile_b(bp, num_cores, max_tile_b):
    """Batch-tile policy:
       * single TensorCore (v5e/v6e): one big tile (grid of 1) when it fits,
       * two TensorCores (v7x): exactly `num_cores` >=128-row parallel tiles."""
    if num_cores > 1 and bp >= num_cores * 128:
        tile = _round_up(pl.cdiv(bp, num_cores), 128)
    else:
        tile = bp
    return min(tile, max_tile_b)


# --------------------------------------------------------------------------- param prep (one-time)
def prepare_params(params, *, num_tactics, hidden_size, num_layers,
                   compute_dtype=jnp.float32):
    """Hoisted, one-time weight preparation (padding + casting).

    Weights are stored pre-transposed as (in_features, out_features) so the
    kernel computes y = x @ W + b.  The hidden/feature axis is zero-padded to a
    multiple of 128 lanes, tactics to a multiple of 8 sublanes.  Use
    compute_dtype=jnp.bfloat16 on v6e/v7x for large H (accumulation stays f32).
    """
    assert num_layers >= 2, "need at least an input and an output layer"
    num_hidden = num_layers - 1
    w_in, b_in, w_hid, b_hid, w_out, b_out = params

    Hp = _round_up(hidden_size, 128)
    Tp = _round_up(num_tactics, 8)

    return dict(
        w_in=_pad_to(_pad_to(w_in, 0, Tp), 1, Hp).astype(compute_dtype),   # (Tp, Hp)
        b_in=_pad_to(b_in, 1, Hp).astype(jnp.float32),                     # (1, Hp)
        w_hid=_pad_to(_pad_to(w_hid, 1, Hp), 2, Hp).astype(compute_dtype), # (L, Hp, Hp)
        b_hid=_pad_to(b_hid, 2, Hp).astype(jnp.float32),                   # (L, 1, Hp)
        w_out=_pad_to(w_out, 0, Hp).astype(compute_dtype),                 # (Hp, 1)
        b_out=b_out.astype(jnp.float32),                                   # (1, 1)
        Hp=Hp, Tp=Tp, num_hidden=num_hidden,
    )


# --------------------------------------------------------------------------- forward
def simplified_q_forward(tactics_batch, prepped, *, max_tile_b=1024):
    """tactics_batch: (B,) int tactic indices.  Returns (B,) float32 scores."""
    B = tactics_batch.shape[0]
    Hp, Tp, num_hidden = prepped["Hp"], prepped["Tp"], prepped["num_hidden"]

    # Batch tiling (only the tiny id vector is padded per call; weights are prepped).
    bp0 = _round_up(max(B, 8), 8)
    tile_b = _choose_tile_b(bp0, _num_tensorcores(), max_tile_b)
    Bp = _round_up(bp0, tile_b)
    tac = jnp.zeros((Bp, 1), jnp.int32).at[:B, 0].set(tactics_batch.astype(jnp.int32))
    grid = (Bp // tile_b,)

    kernel = functools.partial(_mlp_onehot_kernel,
                               num_hidden=num_hidden, num_tactics_p=Tp)

    out = pl.pallas_call(
        kernel,
        out_shape=jax.ShapeDtypeStruct((Bp, 1), jnp.float32),
        grid_spec=pltpu.PrefetchScalarGridSpec(
            num_scalar_prefetch=0,
            grid=grid,
            in_specs=[
                pl.BlockSpec((tile_b, 1), lambda i: (i, 0)),              # tactic ids
                pl.BlockSpec((Tp, Hp), lambda i: (0, 0)),                 # W_in^T
                pl.BlockSpec((1, Hp), lambda i: (0, 0)),                  # b_in
                pl.BlockSpec((num_hidden, Hp, Hp), lambda i: (0, 0, 0)),  # W_hid^T stack
                pl.BlockSpec((num_hidden, 1, Hp), lambda i: (0, 0, 0)),   # b_hid stack
                pl.BlockSpec((Hp, 1), lambda i: (0, 0)),                  # W_out
                pl.BlockSpec((1, 1), lambda i: (0, 0)),                   # b_out
            ],
            out_specs=pl.BlockSpec((tile_b, 1), lambda i: (i, 0)),
        ),
        compiler_params=pltpu.CompilerParams(
            dimension_semantics=("parallel",)),
    )(tac, prepped["w_in"], prepped["b_in"], prepped["w_hid"], prepped["b_hid"],
      prepped["w_out"], prepped["b_out"])

    return out[:B, 0]


# --------------------------------------------------------------------------- params / reference
def init_params(key, num_tactics, hidden_size, num_layers):
    """PyTorch-Linear-style uniform init; weights stored as (in_features, out_features)."""
    num_hidden = num_layers - 1
    ks = jax.random.split(key, 6)

    def lin(k, fan_in, shape):
        bound = 1.0 / jnp.sqrt(fan_in)
        return jax.random.uniform(k, shape, jnp.float32, -bound, bound)

    w_in = lin(ks[0], num_tactics, (num_tactics, hidden_size))
    b_in = lin(ks[1], num_tactics, (1, hidden_size))
    w_hid = lin(ks[2], hidden_size, (num_hidden, hidden_size, hidden_size))
    b_hid = lin(ks[3], hidden_size, (num_hidden, 1, hidden_size))
    w_out = lin(ks[4], hidden_size, (hidden_size, 1))
    b_out = lin(ks[5], hidden_size, (1, 1))
    return (w_in, b_in, w_hid, b_hid, w_out, b_out)


def _reference(tactics_batch, params, num_tactics, num_layers):
    """Pure-JAX reference of the PyTorch forward."""
    w_in, b_in, w_hid, b_hid, w_out, b_out = params
    one_hot = jax.nn.one_hot(tactics_batch, num_tactics, dtype=jnp.float32)
    h = one_hot @ w_in + b_in
    for l in range(num_layers - 1):
        h = jnp.maximum(h, 0.0)
        h = h @ w_hid[l] + b_hid[l]
    h = jnp.maximum(h, 0.0)
    return (h @ w_out + b_out).reshape(tactics_batch.shape[0])


# --------------------------------------------------------------------------- demo
if __name__ == "__main__":
    NUM_TACTICS = 32
    HIDDEN_SIZE = 32      # padded to 128 lanes inside prepare_params
    NUM_LAYERS = 3
    BATCH = 16

    key = jax.random.PRNGKey(0)
    k_param, k_tac = jax.random.split(key)

    params = init_params(k_param, NUM_TACTICS, HIDDEN_SIZE, NUM_LAYERS)
    tactics_batch = jax.random.randint(k_tac, (BATCH,), 0, NUM_TACTICS, jnp.int32)

    # One-time weight prep (f32 for a tight check; use jnp.bfloat16 on v6e/v7x
    # for large H and relax the tolerance accordingly).
    prepped = prepare_params(params, num_tactics=NUM_TACTICS,
                             hidden_size=HIDDEN_SIZE, num_layers=NUM_LAYERS,
                             compute_dtype=jnp.float32)

    out = jax.block_until_ready(simplified_q_forward(tactics_batch, prepped))

    ref = _reference(tactics_batch, params, NUM_TACTICS, NUM_LAYERS)
    assert out.shape == (BATCH,)
    assert jnp.allclose(out, ref, atol=1e-4, rtol=1e-4), \
        float(jnp.max(jnp.abs(out - ref)))

    print("KERNEL_OK")
</pallas_src>

<mosaic_0001>
module attributes {stable_mosaic.version = 11 : i64} {
  func.func @_mlp_onehot_kernel(%arg0: i32, %arg1: memref<16x1xi32, #tpu.memory_space<vmem>>, %arg2: memref<32x128xf32, #tpu.memory_space<vmem>>, %arg3: memref<1x128xf32, #tpu.memory_space<vmem>>, %arg4: memref<2x128x128xf32, #tpu.memory_space<vmem>>, %arg5: memref<2x1x128xf32, #tpu.memory_space<vmem>>, %arg6: memref<128x1xf32, #tpu.memory_space<vmem>>, %arg7: memref<1x1xf32, #tpu.memory_space<vmem>>, %arg8: memref<16x1xf32, #tpu.memory_space<vmem>>) attributes {dimension_semantics = [#tpu.dimension_semantics<parallel>], iteration_bounds = array<i64: 1>, scalar_prefetch = 0 : i64, scratch_operands = 0 : i64, tpu.core_type = #tpu.core_type<tc>, window_params = [{transform_indices = @transform_0, window_bounds = array<i64: 16, 1>}, {pipeline_mode = #tpu.pipeline_mode<synchronous>, transform_indices = @transform_1, window_bounds = array<i64: 32, 128>}, {pipeline_mode = #tpu.pipeline_mode<synchronous>, transform_indices = @transform_2, window_bounds = array<i64: 1, 128>}, {pipeline_mode = #tpu.pipeline_mode<synchronous>, transform_indices = @transform_3, window_bounds = array<i64: 2, 128, 128>}, {pipeline_mode = #tpu.pipeline_mode<synchronous>, transform_indices = @transform_4, window_bounds = array<i64: 2, 1, 128>}, {pipeline_mode = #tpu.pipeline_mode<synchronous>, transform_indices = @transform_5, window_bounds = array<i64: 128, 1>}, {pipeline_mode = #tpu.pipeline_mode<synchronous>, transform_indices = @transform_6, window_bounds = array<i64: 1, 1>}, {transform_indices = @transform_7, window_bounds = array<i64: 16, 1>}]} {
    %c0 = arith.constant 0 : index
    %c0_0 = arith.constant 0 : index
    %0 = vector.load %arg1[%c0, %c0_0] : memref<16x1xi32, #tpu.memory_space<vmem>>, vector<16x1xi32>
    %1 = tpu.iota {dimensions = array<i32: 1>} : vector<16x32xi32>
    %2 = vector.broadcast %0 : vector<16x1xi32> to vector<16x32xi32>
    %3 = arith.cmpi eq, %1, %2 : vector<16x32xi32>
    %4 = arith.extui %3 : vector<16x32xi1> to vector<16x32xi32>
    %5 = arith.sitofp %4 : vector<16x32xi32> to vector<16x32xf32>
    %c0_1 = arith.constant 0 : index
    %c0_2 = arith.constant 0 : index
    %6 = vector.load %arg2[%c0_1, %c0_2] : memref<32x128xf32, #tpu.memory_space<vmem>>, vector<32x128xf32>
    %cst = arith.constant dense<0.000000e+00> : vector<16x128xf32>
    %7 = tpu.matmul %5, %6, %cst {dimension_numbers = #tpu.dot_dimension_numbers<[1], [0], [0], [1], [0, 0, 1, 1], [], []>} : vector<16x32xf32>, vector<32x128xf32>, vector<16x128xf32> -> vector<16x128xf32>
    %c0_3 = arith.constant 0 : index
    %c0_4 = arith.constant 0 : index
    %8 = vector.load %arg3[%c0_3, %c0_4] : memref<1x128xf32, #tpu.memory_space<vmem>>, vector<1x128xf32>
    %9 = vector.broadcast %8 : vector<1x128xf32> to vector<16x128xf32>
    %10 = arith.addf %7, %9 : vector<16x128xf32>
    %cst_5 = arith.constant 0.000000e+00 : f32
    %11 = vector.broadcast %cst_5 : f32 to vector<16x128xf32>
    %12 = arith.maximumf %10, %11 : vector<16x128xf32>
    %c0_6 = arith.constant 0 : index
    %c0_7 = arith.constant 0 : index
    %c0_8 = arith.constant 0 : index
    %13 = vector.load %arg4[%c0_6, %c0_7, %c0_8] : memref<2x128x128xf32, #tpu.memory_space<vmem>>, vector<1x128x128xf32>
    %14 = vector.shape_cast %13 : vector<1x128x128xf32> to vector<128x128xf32>
    %cst_9 = arith.constant dense<0.000000e+00> : vector<16x128xf32>
    %15 = tpu.matmul %12, %14, %cst_9 {dimension_numbers = #tpu.dot_dimension_numbers<[1], [0], [0], [1], [0, 0, 1, 1], [], []>} : vector<16x128xf32>, vector<128x128xf32>, vector<16x128xf32> -> vector<16x128xf32>
    %c0_10 = arith.constant 0 : index
    %c0_11 = arith.constant 0 : index
    %c0_12 = arith.constant 0 : index
    %16 = vector.load %arg5[%c0_10, %c0_11, %c0_12] : memref<2x1x128xf32, #tpu.memory_space<vmem>>, vector<1x1x128xf32>
    %17 = vector.shape_cast %16 : vector<1x1x128xf32> to vector<1x128xf32>
    %18 = vector.broadcast %17 : vector<1x128xf32> to vector<16x128xf32>
    %19 = arith.addf %15, %18 : vector<16x128xf32>
    %cst_13 = arith.constant 0.000000e+00 : f32
    %20 = vector.broadcast %cst_13 : f32 to vector<16x128xf32>
    %21 = arith.maximumf %19, %20 : vector<16x128xf32>
    %c1 = arith.constant 1 : index
    %c0_14 = arith.constant 0 : index
    %c0_15 = arith.constant 0 : index
    %22 = vector.load %arg4[%c1, %c0_14, %c0_15] : memref<2x128x128xf32, #tpu.memory_space<vmem>>, vector<1x128x128xf32>
    %23 = vector.shape_cast %22 : vector<1x128x128xf32> to vector<128x128xf32>
    %cst_16 = arith.constant dense<0.000000e+00> : vector<16x128xf32>
    %24 = tpu.matmul %21, %23, %cst_16 {dimension_numbers = #tpu.dot_dimension_numbers<[1], [0], [0], [1], [0, 0, 1, 1], [], []>} : vector<16x128xf32>, vector<128x128xf32>, vector<16x128xf32> -> vector<16x128xf32>
    %c1_17 = arith.constant 1 : index
    %c0_18 = arith.constant 0 : index
    %c0_19 = arith.constant 0 : index
    %25 = vector.load %arg5[%c1_17, %c0_18, %c0_19] : memref<2x1x128xf32, #tpu.memory_space<vmem>>, vector<1x1x128xf32>
    %26 = vector.shape_cast %25 : vector<1x1x128xf32> to vector<1x128xf32>
    %27 = vector.broadcast %26 : vector<1x128xf32> to vector<16x128xf32>
    %28 = arith.addf %24, %27 : vector<16x128xf32>
    %cst_20 = arith.constant 0.000000e+00 : f32
    %29 = vector.broadcast %cst_20 : f32 to vector<16x128xf32>
    %30 = arith.maximumf %28, %29 : vector<16x128xf32>
    %c0_21 = arith.constant 0 : index
    %c0_22 = arith.constant 0 : index
    %31 = vector.load %arg6[%c0_21, %c0_22] : memref<128x1xf32, #tpu.memory_space<vmem>>, vector<128x1xf32>
    %cst_23 = arith.constant dense<0.000000e+00> : vector<16x1xf32>
    %32 = tpu.matmul %30, %31, %cst_23 {dimension_numbers = #tpu.dot_dimension_numbers<[1], [0], [0], [1], [0, 0, 1, 1], [], []>} : vector<16x128xf32>, vector<128x1xf32>, vector<16x1xf32> -> vector<16x1xf32>
    %c0_24 = arith.constant 0 : index
    %c0_25 = arith.constant 0 : index
    %33 = vector.load %arg7[%c0_24, %c0_25] : memref<1x1xf32, #tpu.memory_space<vmem>>, vector<1x1xf32>
    %34 = vector.broadcast %33 : vector<1x1xf32> to vector<16x1xf32>
    %35 = arith.addf %32, %34 : vector<16x1xf32>
    %c0_26 = arith.constant 0 : index
    %c0_27 = arith.constant 0 : index
    %36 = vector.load %arg8[%c0_26, %c0_27] : memref<16x1xf32, #tpu.memory_space<vmem>>, vector<16x1xf32>
    tpu.vector_store %arg8[%c0_26, %c0_27], %35 {strides = array<i32>} : memref<16x1xf32, #tpu.memory_space<vmem>>, vector<16x1xf32>,
    return
  }
  func.func @transform_0(%arg0: i32) -> (i32, i32) {
    %c0_i32 = arith.constant 0 : i32
    %c0_i32_0 = arith.constant 0 : i32
    return %arg0, %c0_i32 : i32, i32
  }
  func.func @transform_1(%arg0: i32) -> (i32, i32) {
    %c0_i32 = arith.constant 0 : i32
    %c0_i32_0 = arith.constant 0 : i32
    %c0_i32_1 = arith.constant 0 : i32
    return %c0_i32, %c0_i32_0 : i32, i32
  }
  func.func @transform_2(%arg0: i32) -> (i32, i32) {
    %c0_i32 = arith.constant 0 : i32
    %c0_i32_0 = arith.constant 0 : i32
    %c0_i32_1 = arith.constant 0 : i32
    return %c0_i32, %c0_i32_0 : i32, i32
  }
  func.func @transform_3(%arg0: i32) -> (i32, i32, i32) {
    %c0_i32 = arith.constant 0 : i32
    %c0_i32_0 = arith.constant 0 : i32
    %c0_i32_1 = arith.constant 0 : i32
    %c0_i32_2 = arith.constant 0 : i32
    return %c0_i32, %c0_i32_0, %c0_i32_1 : i32, i32, i32
  }
  func.func @transform_4(%arg0: i32) -> (i32, i32, i32) {
    %c0_i32 = arith.constant 0 : i32
    %c0_i32_0 = arith.constant 0 : i32
    %c0_i32_1 = arith.constant 0 : i32
    %c0_i32_2 = arith.constant 0 : i32
    return %c0_i32, %c0_i32_0, %c0_i32_1 : i32, i32, i32
  }
  func.func @transform_5(%arg0: i32) -> (i32, i32) {
    %c0_i32 = arith.constant 0 : i32
    %c0_i32_0 = arith.constant 0 : i32
    %c0_i32_1 = arith.constant 0 : i32
    return %c0_i32, %c0_i32_0 : i32, i32
  }
  func.func @transform_6(%arg0: i32) -> (i32, i32) {
    %c0_i32 = arith.constant 0 : i32
    %c0_i32_0 = arith.constant 0 : i32
    %c0_i32_1 = arith.constant 0 : i32
    return %c0_i32, %c0_i32_0 : i32, i32
  }
  func.func @transform_7(%arg0: i32) -> (i32, i32) {
    %c0_i32 = arith.constant 0 : i32
    %c0_i32_0 = arith.constant 0 : i32
    return %arg0, %c0_i32 : i32, i32
  }
}

</mosaic_0001>

<llo_original>
// kernel: tpu_custom_call.1
$region0: #{tpu_custom_call.1}
  #allocation0 [shape = 'u32[]', space=smem, size = 0x4, offset = 0x4, fixed_abs, tag = 'smem constant byte address 0x4 - core index']
  #allocation1 [shape = 'u32[144,128]{1,0:T(1,128)}', space=vmem, size = 0x12000, scoped, tag = 'internal scratch']
  #allocation2 [shape = 'f32[1,1]{1,0:T(1,128)S(1)}', space=vmem, size = 0x200, scoped, tag = 'scoped memory for tpu_custom_call.1']
  %s0 = inlined_call_operand.vmem [shape: s32[16,1], index: 0, kind: input, shape index: {}]
  %s1 = inlined_call_operand.vmem [shape: f32[32,128], index: 1, kind: input, shape index: {}]
  %s2 = inlined_call_operand.vmem [shape: f32[1,128], index: 2, kind: input, shape index: {}]
  %s3 = inlined_call_operand.hbm [shape: f32[2,128,128], index: 3, kind: input, shape index: {}]
  %s4 = inlined_call_operand.vmem [shape: f32[2,1,128], index: 4, kind: input, shape index: {}]
  %s5 = inlined_call_operand.vmem [shape: f32[128,1], index: 5, kind: input, shape index: {}]
  %s6 = inlined_call_operand.<no memory space> [shape: f32[1,1], index: 6, kind: input, shape index: {}]
  %s7 = inlined_call_operand.vmem [shape: f32[16,1], index: 7, kind: output, shape index: {}]
  %s8 = sld [smem:[#allocation0]]
  $region42: #{tpu_custom_call.1} parent=0
    _
  %s10 = ssub.s32 1, %s8
  %s11 = scalar_select 0, %s10, %s8
  %v12 = vstv %s6
  %13 = vst [vmem:[#allocation2] sm:$0x1] %v12
  $region1: #{tpu_custom_call.1} parent=0
    #allocation3 [shape = 'u8[131072]{0}', space=vmem, size = 0x20000, scoped, tag = 'input window, operand 3, single buffered']
    #allocation4 [shape = 's32[1]{0}', space=sflag, size = 0x4, scoped, tag = 'scoped memory for tpu_custom_call.1']
    %14 = vsyncpa [#allocation4], 0
    // Predicated region
    $region2: #{tpu_custom_call.1} parent=1 // pred_check
      _
    $region3: #{tpu_custom_call.1} parent=1 // pred_check_branch
      %16 = sbr.rel (0) target = $region5
    $region4: #{tpu_custom_call.1} parent=1 // pred_region
      _
    $region5: #{tpu_custom_call.1} parent=1 // pred_fallthru
      _
    // Predicated region
    $region6: #{tpu_custom_call.1} parent=1 // pred_check
      _
    $region7: #{tpu_custom_call.1} parent=1 // pred_check_branch
      %18 = sbr.rel (0) target = $region9
    $region8: #{tpu_custom_call.1} parent=1 // pred_region
      _
    $region9: #{tpu_custom_call.1} parent=1 // pred_fallthru
      _
    // Predicated region
    $region10: #{tpu_custom_call.1} parent=1 // pred_check
      _
    $region11: #{tpu_custom_call.1} parent=1 // pred_check_branch
      %20 = sbr.rel (0) target = $region13
    $region12: #{tpu_custom_call.1} parent=1 // pred_region
      _
    $region13: #{tpu_custom_call.1} parent=1 // pred_fallthru
      _
    // Predicated region
    $region14: #{tpu_custom_call.1} parent=1 // pred_check
      _
    $region15: #{tpu_custom_call.1} parent=1 // pred_check_branch
      %22 = sbr.rel (0) target = $region17
    $region16: #{tpu_custom_call.1} parent=1 // pred_region
      %s24 = ssub.s32 4096, 4096
      %25 = vsyncadd [#allocation4], %s24
      %s26 = sshll.u32 [#allocation3], 4
      %s27 = int_to_ptr.vmem [resolvable:$true] %s26
      %32 = dma.hbm_to_vmem [thread:$0]  %s3, 4096, %s27, [#allocation4], 128, 128, 8
    $region17: #{tpu_custom_call.1} parent=1 // pred_fallthru
      _
    // Predicated region
    $region18: #{tpu_custom_call.1} parent=1 // pred_check
      _
    $region19: #{tpu_custom_call.1} parent=1 // pred_check_branch
      %34 = sbr.rel (0) target = $region21
    $region20: #{tpu_custom_call.1} parent=1 // pred_region
      _
    $region21: #{tpu_custom_call.1} parent=1 // pred_fallthru
      _
    // Predicated region
    $region22: #{tpu_custom_call.1} parent=1 // pred_check
      _
    $region23: #{tpu_custom_call.1} parent=1 // pred_check_branch
      %36 = sbr.rel (0) target = $region25
    $region24: #{tpu_custom_call.1} parent=1 // pred_region
      _
    $region25: #{tpu_custom_call.1} parent=1 // pred_fallthru
      _
    // Predicated region
    $region26: #{tpu_custom_call.1} parent=1 // pred_check
      _
    $region27: #{tpu_custom_call.1} parent=1 // pred_check_branch
      %38 = sbr.rel (0) target = $region29
    $region28: #{tpu_custom_call.1} parent=1 // pred_region
      _
    $region29: #{tpu_custom_call.1} parent=1 // pred_fallthru
      _
    // Predicated region
    $region30: #{tpu_custom_call.1} parent=1 // pred_check
      _
    $region31: #{tpu_custom_call.1} parent=1 // pred_check_branch
      %40 = sbr.rel (0) target = $region33
    $region32: #{tpu_custom_call.1} parent=1 // pred_region
      %41 = dma.done [#allocation4], 4096
    $region33: #{tpu_custom_call.1} parent=1 // pred_fallthru
      _
    %v42 = vld [vmem:[%s0] sm:$0xff]
    %v43 = vld [vmem:[%s0 + $0x8] sm:$0xff]
    %v44 = vlaneseq
    %v45 = vand.u32 %v44, 127
    %46 = vset.pattern.permute.xlu0 0
    %47 = vperm.xlu0 %46, %v42
    %v48 = vpop.permute.xlu0 %47
    %49 = vset.pattern.permute.xlu0 0
    %50 = vperm.xlu0 %49, %v43
    %v51 = vpop.permute.xlu0 %50
    %vm52 = vcmp.eq.s32.totalorder %v45, %v48
    %vm53 = vcmp.eq.s32.totalorder %v45, %v51
    %v54 = vsel %vm52, 1, 0
    %v55 = vsel %vm53, 1, 0
    %v56 = vcvt.s32.f32 %v54
    %v57 = vcvt.s32.f32 %v55
    %v58 = vld [vmem:[%s1] sm:$0xff]
    %v59 = vld [vmem:[%s1 + $0x8] sm:$0xff]
    %v60 = vld [vmem:[%s1 + $0x10] sm:$0xff]
    %v61 = vld [vmem:[%s1 + $0x18] sm:$0xff]
    %v62 = vld [vmem:[%s2] sm:$0x1]
    %v64 = vlaneseq
    %v65 = vshrl.u32 %v64, 7
    %v66 = vsub.s32 0, %v65
    %v67 = vrot.slane %v62, %v66
    %vm69 = vcmask 261120
    %v71 = vsel %vm69, %v56, 0
    %v74 = vsel %vm69, %v57, 0
    %76 = vmatprep.subr.mxu0 0.0
    %77 = vmatpush1.msra.mxu0 0.0
    %78 = vmatprep.subr.mxu0 0.0
    %79 = vmatpush1.msra.mxu0 0.0
    %80 = vmatprep.subr.mxu0 0.0
    %81 = vmatpush1.msra.mxu0 0.0
    %82 = vmatprep.subr.mxu0 0.0
    %83 = vmatpush1.msra.mxu0 0.0
    %84 = vmatprep.subr.mxu0 0.0
    %85 = vmatpush1.msra.mxu0 0.0
    %86 = vmatprep.subr.mxu0 0.0
    %87 = vmatpush1.msra.mxu0 0.0
    %88 = vmatprep.subr.mxu0 0.0
    %89 = vmatpush1.msra.mxu0 0.0
    %90 = vmatprep.subr.mxu0 0.0
    %91 = vmatpush1.msra.mxu0 0.0
    %92 = vmatprep.subr.mxu0 0.0
    %93 = vmatpush1.msra.mxu0 0.0
    %94 = vmatprep.subr.mxu0 0.0
    %95 = vmatpush1.msra.mxu0 0.0
    %96 = vmatprep.subr.mxu0 0.0
    %97 = vmatpush1.msra.mxu0 0.0
    %98 = vmatprep.subr.mxu0 0.0
    %99 = vmatpush1.msra.mxu0 0.0
    %100 = vmatprep.subr.mxu0 0.0
    %101 = vmatpush1.msra.mxu0 %v61
    %102 = vmatprep.subr.mxu0 0.0
    %103 = vmatpush1.msra.mxu0 %v60
    %104 = vmatprep.subr.mxu0 0.0
    %105 = vmatpush1.msra.mxu0 %v59
    %106 = vmatprep.subr.mxu0 0.0
    %107 = vmatpush1.msra.mxu0 %v58
    %108 = vmatprep.subr.mxu0 0.0
    %109 = vmatpush2.msra.mxu0 0.0
    %110 = vmatprep.subr.mxu0 0.0
    %111 = vmatpush2.msra.mxu0 0.0
    %112 = vmatprep.subr.mxu0 0.0
    %113 = vmatpush2.msra.mxu0 0.0
    %114 = vmatprep.subr.mxu0 0.0
    %115 = vmatpush2.msra.mxu0 0.0
    %116 = vmatprep.subr.mxu0 0.0
    %117 = vmatpush2.msra.mxu0 0.0
    %118 = vmatprep.subr.mxu0 0.0
    %119 = vmatpush2.msra.mxu0 0.0
    %120 = vmatprep.subr.mxu0 0.0
    %121 = vmatpush2.msra.mxu0 0.0
    %122 = vmatprep.subr.mxu0 0.0
    %123 = vmatpush2.msra.mxu0 0.0
    %124 = vmatprep.subr.mxu0 0.0
    %125 = vmatpush2.msra.mxu0 0.0
    %126 = vmatprep.subr.mxu0 0.0
    %127 = vmatpush2.msra.mxu0 0.0
    %128 = vmatprep.subr.mxu0 0.0
    %129 = vmatpush2.msra.mxu0 0.0
    %130 = vmatprep.subr.mxu0 0.0
    %131 = vmatpush2.msra.mxu0 0.0
    %132 = vmatprep.subr.mxu0 0.0
    %133 = vmatpush2.msra.mxu0 0.0
    %134 = vmatprep.subr.mxu0 0.0
    %135 = vmatpush2.msra.mxu0 0.0
    %136 = vmatprep.subr.mxu0 0.0
    %137 = vmatpush2.msra.mxu0 0.0
    %138 = vmatprep.subr.mxu0 0.0
    %139 = vmatpush2.msra.mxu0 0.0
    %140 = vmatprep.mubr.f32.mxu0 0.0
    %141 = vmatmul.mubr.f32.gmra.mxu0 %v71
    %v142 = vpop.f32.mrf.mxu0
    %v143 = vadd.f32 %v67, %v142
    %v144 = vpop.f32.mrf.mxu0
    %145 = vmatprep.mubr.f32.mxu0 0.0
    %146 = vmatmul.mubr.f32.gmra.mxu0 %v74
    %v147 = vpop.f32.mrf.mxu0
    %v148 = vadd.f32 %v67, %v147
    %v149 = vpop.f32.mrf.mxu0
    %150 = vdwg.mxu0
    %v151 = vmax.f32 %v143, 0.0
    %v152 = vmax.f32 %v148, 0.0
    %v153 = vld [vmem:[#allocation3] sm:$0xff]
    %v154 = vld [vmem:[#allocation3 + $0x8] sm:$0xff]
    %v155 = vld [vmem:[#allocation3 + $0x10] sm:$0xff]
    %v156 = vld [vmem:[#allocation3 + $0x18] sm:$0xff]
    %v157 = vld [vmem:[#allocation3 + $0x20] sm:$0xff]
    %v158 = vld [vmem:[#allocation3 + $0x28] sm:$0xff]
    %v159 = vld [vmem:[#allocation3 + $0x30] sm:$0xff]
    %v160 = vld [vmem:[#allocation3 + $0x38] sm:$0xff]
    %v161 = vld [vmem:[#allocation3 + $0x40] sm:$0xff]
    %v162 = vld [vmem:[#allocation3 + $0x48] sm:$0xff]
    %v163 = vld [vmem:[#allocation3 + $0x50] sm:$0xff]
    %v164 = vld [vmem:[#allocation3 + $0x58] sm:$0xff]
    %v165 = vld [vmem:[#allocation3 + $0x60] sm:$0xff]
    %v166 = vld [vmem:[#allocation3 + $0x68] sm:$0xff]
    %v167 = vld [vmem:[#allocation3 + $0x70] sm:$0xff]
    %v168 = vld [vmem:[#allocation3 + $0x78] sm:$0xff]
    %v169 = vld [vmem:[%s4] sm:$0x1]
    %v171 = vlaneseq
    %v172 = vshrl.u32 %v171, 7
    %v173 = vsub.s32 0, %v172
    %v174 = vrot.slane %v169, %v173
    %176 = vmatprep.subr.mxu0 0.0
    %177 = vmatpush1.msra.mxu0 %v168
    %178 = vmatprep.subr.mxu0 0.0
    %179 = vmatpush1.msra.mxu0 %v167
    %180 = vmatprep.subr.mxu0 0.0
    %181 = vmatpush1.msra.mxu0 %v166
    %182 = vmatprep.subr.mxu0 0.0
    %183 = vmatpush1.msra.mxu0 %v165
    %184 = vmatprep.subr.mxu0 0.0
    %185 = vmatpush1.msra.mxu0 %v164
    %186 = vmatprep.subr.mxu0 0.0
    %187 = vmatpush1.msra.mxu0 %v163
    %188 = vmatprep.subr.mxu0 0.0
    %189 = vmatpush1.msra.mxu0 %v162
    %190 = vmatprep.subr.mxu0 0.0
    %191 = vmatpush1.msra.mxu0 %v161
    %192 = vmatprep.subr.mxu0 0.0
    %193 = vmatpush1.msra.mxu0 %v160
    %194 = vmatprep.subr.mxu0 0.0
    %195 = vmatpush1.msra.mxu0 %v159
    %196 = vmatprep.subr.mxu0 0.0
    %197 = vmatpush1.msra.mxu0 %v158
    %198 = vmatprep.subr.mxu0 0.0
    %199 = vmatpush1.msra.mxu0 %v157
    %200 = vmatprep.subr.mxu0 0.0
    %201 = vmatpush1.msra.mxu0 %v156
    %202 = vmatprep.subr.mxu0 0.0
    %203 = vmatpush1.msra.mxu0 %v155
    %204 = vmatprep.subr.mxu0 0.0
    %205 = vmatpush1.msra.mxu0 %v154
    %206 = vmatprep.subr.mxu0 0.0
    %207 = vmatpush1.msra.mxu0 %v153
    %208 = vmatprep.subr.mxu0 0.0
    %209 = vmatpush2.msra.mxu0 0.0
    %210 = vmatprep.subr.mxu0 0.0
    %211 = vmatpush2.msra.mxu0 0.0
    %212 = vmatprep.subr.mxu0 0.0
    %213 = vmatpush2.msra.mxu0 0.0
    %214 = vmatprep.subr.mxu0 0.0
    %215 = vmatpush2.msra.mxu0 0.0
    %216 = vmatprep.subr.mxu0 0.0
    %217 = vmatpush2.msra.mxu0 0.0
    %218 = vmatprep.subr.mxu0 0.0
    %219 = vmatpush2.msra.mxu0 0.0
    %220 = vmatprep.subr.mxu0 0.0
    %221 = vmatpush2.msra.mxu0 0.0
    %222 = vmatprep.subr.mxu0 0.0
    %223 = vmatpush2.msra.mxu0 0.0
    %224 = vmatprep.subr.mxu0 0.0
    %225 = vmatpush2.msra.mxu0 0.0
    %226 = vmatprep.subr.mxu0 0.0
    %227 = vmatpush2.msra.mxu0 0.0
    %228 = vmatprep.subr.mxu0 0.0
    %229 = vmatpush2.msra.mxu0 0.0
    %230 = vmatprep.subr.mxu0 0.0
    %231 = vmatpush2.msra.mxu0 0.0
    %232 = vmatprep.subr.mxu0 0.0
    %233 = vmatpush2.msra.mxu0 0.0
    %234 = vmatprep.subr.mxu0 0.0
    %235 = vmatpush2.msra.mxu0 0.0
    %236 = vmatprep.subr.mxu0 0.0
    %237 = vmatpush2.msra.mxu0 0.0
    %238 = vmatprep.subr.mxu0 0.0
    %239 = vmatpush2.msra.mxu0 0.0
    %240 = vmatprep.mubr.f32.mxu0 0.0
    %241 = vmatmul.mubr.f32.gmra.mxu0 %v151
    %v242 = vpop.f32.mrf.mxu0
    %v243 = vadd.f32 %v174, %v242
    %v244 = vpop.f32.mrf.mxu0
    %245 = vmatprep.mubr.f32.mxu0 0.0
    %246 = vmatmul.mubr.f32.gmra.mxu0 %v152
    %v247 = vpop.f32.mrf.mxu0
    %v248 = vadd.f32 %v174, %v247
    %v249 = vpop.f32.mrf.mxu0
    %250 = vdwg.mxu0
    %v251 = vmax.f32 %v243, 0.0
    %v252 = vmax.f32 %v248, 0.0
    %s253 = scalar_lea.vmem [#allocation3], 128
    %v254 = vld [vmem:[%s253] sm:$0xff]
    %v255 = vld [vmem:[%s253 + $0x8] sm:$0xff]
    %v256 = vld [vmem:[%s253 + $0x10] sm:$0xff]
    %v257 = vld [vmem:[%s253 + $0x18] sm:$0xff]
    %v258 = vld [vmem:[%s253 + $0x20] sm:$0xff]
    %v259 = vld [vmem:[%s253 + $0x28] sm:$0xff]
    %v260 = vld [vmem:[%s253 + $0x30] sm:$0xff]
    %v261 = vld [vmem:[%s253 + $0x38] sm:$0xff]
    %v262 = vld [vmem:[%s253 + $0x40] sm:$0xff]
    %v263 = vld [vmem:[%s253 + $0x48] sm:$0xff]
    %v264 = vld [vmem:[%s253 + $0x50] sm:$0xff]
    %v265 = vld [vmem:[%s253 + $0x58] sm:$0xff]
    %v266 = vld [vmem:[%s253 + $0x60] sm:$0xff]
    %v267 = vld [vmem:[%s253 + $0x68] sm:$0xff]
    %v268 = vld [vmem:[%s253 + $0x70] sm:$0xff]
    %v269 = vld [vmem:[%s253 + $0x78] sm:$0xff]
    %s270 = scalar_lea.vmem %s4, 1
    %v271 = vld [vmem:[%s270] sm:$0x1]
    %v273 = vlaneseq
    %v274 = vshrl.u32 %v273, 7
    %v275 = vsub.s32 0, %v274
    %v276 = vrot.slane %v271, %v275
    %278 = vmatprep.subr.mxu0 0.0
    %279 = vmatpush1.msra.mxu0 %v269
    %280 = vmatprep.subr.mxu0 0.0
    %281 = vmatpush1.msra.mxu0 %v268
    %282 = vmatprep.subr.mxu0 0.0
    %283 = vmatpush1.msra.mxu0 %v267
    %284 = vmatprep.subr.mxu0 0.0
    %285 = vmatpush1.msra.mxu0 %v266
    %286 = vmatprep.subr.mxu0 0.0
    %287 = vmatpush1.msra.mxu0 %v265
    %288 = vmatprep.subr.mxu0 0.0
    %289 = vmatpush1.msra.mxu0 %v264
    %290 = vmatprep.subr.mxu0 0.0
    %291 = vmatpush1.msra.mxu0 %v263
    %292 = vmatprep.subr.mxu0 0.0
    %293 = vmatpush1.msra.mxu0 %v262
    %294 = vmatprep.subr.mxu0 0.0
    %295 = vmatpush1.msra.mxu0 %v261
    %296 = vmatprep.subr.mxu0 0.0
    %297 = vmatpush1.msra.mxu0 %v260
    %298 = vmatprep.subr.mxu0 0.0
    %299 = vmatpush1.msra.mxu0 %v259
    %300 = vmatprep.subr.mxu0 0.0
    %301 = vmatpush1.msra.mxu0 %v258
    %302 = vmatprep.subr.mxu0 0.0
    %303 = vmatpush1.msra.mxu0 %v257
    %304 = vmatprep.subr.mxu0 0.0
    %305 = vmatpush1.msra.mxu0 %v256
    %306 = vmatprep.subr.mxu0 0.0
    %307 = vmatpush1.msra.mxu0 %v255
    %308 = vmatprep.subr.mxu0 0.0
    %309 = vmatpush1.msra.mxu0 %v254
    %310 = vmatprep.subr.mxu0 0.0
    %311 = vmatpush2.msra.mxu0 0.0
    %312 = vmatprep.subr.mxu0 0.0
    %313 = vmatpush2.msra.mxu0 0.0
    %314 = vmatprep.subr.mxu0 0.0
    %315 = vmatpush2.msra.mxu0 0.0
    %316 = vmatprep.subr.mxu0 0.0
    %317 = vmatpush2.msra.mxu0 0.0
    %318 = vmatprep.subr.mxu0 0.0
    %319 = vmatpush2.msra.mxu0 0.0
    %320 = vmatprep.subr.mxu0 0.0
    %321 = vmatpush2.msra.mxu0 0.0
    %322 = vmatprep.subr.mxu0 0.0
    %323 = vmatpush2.msra.mxu0 0.0
    %324 = vmatprep.subr.mxu0 0.0
    %325 = vmatpush2.msra.mxu0 0.0
    %326 = vmatprep.subr.mxu0 0.0
    %327 = vmatpush2.msra.mxu0 0.0
    %328 = vmatprep.subr.mxu0 0.0
    %329 = vmatpush2.msra.mxu0 0.0
    %330 = vmatprep.subr.mxu0 0.0
    %331 = vmatpush2.msra.mxu0 0.0
    %332 = vmatprep.subr.mxu0 0.0
    %333 = vmatpush2.msra.mxu0 0.0
    %334 = vmatprep.subr.mxu0 0.0
    %335 = vmatpush2.msra.mxu0 0.0
    %336 = vmatprep.subr.mxu0 0.0
    %337 = vmatpush2.msra.mxu0 0.0
    %338 = vmatprep.subr.mxu0 0.0
    %339 = vmatpush2.msra.mxu0 0.0
    %340 = vmatprep.subr.mxu0 0.0
    %341 = vmatpush2.msra.mxu0 0.0
    %342 = vmatprep.mubr.f32.mxu0 0.0
    %343 = vmatmul.mubr.f32.gmra.mxu0 %v251
    %v344 = vpop.f32.mrf.mxu0
    %v345 = vadd.f32 %v276, %v344
    %v346 = vpop.f32.mrf.mxu0
    %347 = vmatprep.mubr.f32.mxu0 0.0
    %348 = vmatmul.mubr.f32.gmra.mxu0 %v252
    %v349 = vpop.f32.mrf.mxu0
    %v350 = vadd.f32 %v276, %v349
    %v351 = vpop.f32.mrf.mxu0
    %352 = vdwg.mxu0
    %v353 = vmax.f32 %v345, 0.0
    %v354 = vmax.f32 %v350, 0.0
    %v355 = vld [vmem:[%s5] sm:$0xff]
    %v356 = vld [vmem:[%s5 + $0x8] sm:$0xff]
    %v357 = vld [vmem:[%s5 + $0x10] sm:$0xff]
    %v358 = vld [vmem:[%s5 + $0x18] sm:$0xff]
    %v359 = vld [vmem:[%s5 + $0x20] sm:$0xff]
    %v360 = vld [vmem:[%s5 + $0x28] sm:$0xff]
    %v361 = vld [vmem:[%s5 + $0x30] sm:$0xff]
    %v362 = vld [vmem:[%s5 + $0x38] sm:$0xff]
    %v363 = vld [vmem:[%s5 + $0x40] sm:$0xff]
    %v364 = vld [vmem:[%s5 + $0x48] sm:$0xff]
    %v365 = vld [vmem:[%s5 + $0x50] sm:$0xff]
    %v366 = vld [vmem:[%s5 + $0x58] sm:$0xff]
    %v367 = vld [vmem:[%s5 + $0x60] sm:$0xff]
    %v368 = vld [vmem:[%s5 + $0x68] sm:$0xff]
    %v369 = vld [vmem:[%s5 + $0x70] sm:$0xff]
    %v370 = vld [vmem:[%s5 + $0x78] sm:$0xff]
    %v371 = vld [vmem:[#allocation2] sm:$0x1]
    %v373 = vlaneseq
    %v374 = vshrl.u32 %v373, 7
    %v375 = vsub.s32 0, %v374
    %v376 = vrot.slane %v371, %v375
    %378 = vmatprep.subr.mxu0 0.0
    %379 = vmatpush1.msra.mxu0 %v370
    %380 = vmatprep.subr.mxu0 0.0
    %381 = vmatpush1.msra.mxu0 %v369
    %382 = vmatprep.subr.mxu0 0.0
    %383 = vmatpush1.msra.mxu0 %v368
    %384 = vmatprep.subr.mxu0 0.0
    %385 = vmatpush1.msra.mxu0 %v367
    %386 = vmatprep.subr.mxu0 0.0
    %387 = vmatpush1.msra.mxu0 %v366
    %388 = vmatprep.subr.mxu0 0.0
    %389 = vmatpush1.msra.mxu0 %v365
    %390 = vmatprep.subr.mxu0 0.0
    %391 = vmatpush1.msra.mxu0 %v364
    %392 = vmatprep.subr.mxu0 0.0
    %393 = vmatpush1.msra.mxu0 %v363
    %394 = vmatprep.subr.mxu0 0.0
    %395 = vmatpush1.msra.mxu0 %v362
    %396 = vmatprep.subr.mxu0 0.0
    %397 = vmatpush1.msra.mxu0 %v361
    %398 = vmatprep.subr.mxu0 0.0
    %399 = vmatpush1.msra.mxu0 %v360
    %400 = vmatprep.subr.mxu0 0.0
    %401 = vmatpush1.msra.mxu0 %v359
    %402 = vmatprep.subr.mxu0 0.0
    %403 = vmatpush1.msra.mxu0 %v358
    %404 = vmatprep.subr.mxu0 0.0
    %405 = vmatpush1.msra.mxu0 %v357
    %406 = vmatprep.subr.mxu0 0.0
    %407 = vmatpush1.msra.mxu0 %v356
    %408 = vmatprep.subr.mxu0 0.0
    %409 = vmatpush1.msra.mxu0 %v355
    %410 = vmatprep.subr.mxu0 0.0
    %411 = vmatpush2.msra.mxu0 0.0
    %412 = vmatprep.subr.mxu0 0.0
    %413 = vmatpush2.msra.mxu0 0.0
    %414 = vmatprep.subr.mxu0 0.0
    %415 = vmatpush2.msra.mxu0 0.0
    %416 = vmatprep.subr.mxu0 0.0
    %417 = vmatpush2.msra.mxu0 0.0
    %418 = vmatprep.subr.mxu0 0.0
    %419 = vmatpush2.msra.mxu0 0.0
    %420 = vmatprep.subr.mxu0 0.0
    %421 = vmatpush2.msra.mxu0 0.0
    %422 = vmatprep.subr.mxu0 0.0
    %423 = vmatpush2.msra.mxu0 0.0
    %424 = vmatprep.subr.mxu0 0.0
    %425 = vmatpush2.msra.mxu0 0.0
    %426 = vmatprep.subr.mxu0 0.0
    %427 = vmatpush2.msra.mxu0 0.0
    %428 = vmatprep.subr.mxu0 0.0
    %429 = vmatpush2.msra.mxu0 0.0
    %430 = vmatprep.subr.mxu0 0.0
    %431 = vmatpush2.msra.mxu0 0.0
    %432 = vmatprep.subr.mxu0 0.0
    %433 = vmatpush2.msra.mxu0 0.0
    %434 = vmatprep.subr.mxu0 0.0
    %435 = vmatpush2.msra.mxu0 0.0
    %436 = vmatprep.subr.mxu0 0.0
    %437 = vmatpush2.msra.mxu0 0.0
    %438 = vmatprep.subr.mxu0 0.0
    %439 = vmatpush2.msra.mxu0 0.0
    %440 = vmatprep.subr.mxu0 0.0
    %441 = vmatpush2.msra.mxu0 0.0
    %442 = vmatprep.mubr.f32.mxu0 0.0
    %443 = vmatmul.mubr.f32.gmra.mxu0 %v353
    %v444 = vpop.f32.mrf.mxu0
    %v445 = vadd.f32 %v376, %v444
    %v446 = vpop.f32.mrf.mxu0
    %447 = vmatprep.mubr.f32.mxu0 0.0
    %448 = vmatmul.mubr.f32.gmra.mxu0 %v354
    %v449 = vpop.f32.mrf.mxu0
    %v450 = vadd.f32 %v376, %v449
    %v451 = vpop.f32.mrf.mxu0
    %452 = vdwg.mxu0
    %vm453 = vcmask 7168
    %454 = vst.msk [vmem:[%s7] sm:$0xff] %vm453, %v445
    %455 = vst.msk [vmem:[%s7 + $0x8] sm:$0xff] %vm453, %v450
    // Predicated region
    $region34: #{tpu_custom_call.1} parent=1 // pred_check
      _
    $region35: #{tpu_custom_call.1} parent=1 // pred_check_branch
      %457 = sbr.rel (0) target = $region37
    $region36: #{tpu_custom_call.1} parent=1 // pred_region
      _
    $region37: #{tpu_custom_call.1} parent=1 // pred_fallthru
      _
    // Predicated region
    $region38: #{tpu_custom_call.1} parent=1 // pred_check
      _
    $region39: #{tpu_custom_call.1} parent=1 // pred_check_branch
      %459 = sbr.rel (0) target = $region41
    $region40: #{tpu_custom_call.1} parent=1 // pred_region
      _
    $region41: #{tpu_custom_call.1} parent=1 // pred_fallthru
      _
    %460 = vsyncpa [#allocation4], 1

</llo_original>
